<compile_context>
chip_gen: v5e
topology: v5e:2x2
jax: 0.10.0
libtpu: 0.0.40
codegen_flags: <defaults>
</compile_context>

<pallas_src>
import jax
import jax.numpy as jnp
from jax import lax
from jax.experimental import pallas as pl
from jax.experimental.pallas import tpu as pltpu

# ---- SH constants (identical to the PyTorch module) -------------------------
C0 = 0.28209479177387814
C1 = 0.4886025119029199
C2 = [1.0925484305920792, -1.0925484305920792, 0.31539156525252005,
      -1.0925484305920792, 0.5462742152960396]
C3 = [-0.5900435899266435, 2.890611442640554, -0.4570457994644658,
      0.3731763325901154, -0.4570457994644658, 1.445305721320277,
      -0.5900435899266435]
C4 = [2.5033429417967046, -1.7701307697799304, 0.9461746957575601,
      -0.6690465435572892, 0.10578554691520431, -0.6690465435572892,
      0.47308734787878004, -1.7701307697799304, 0.6258357354491761]

DEGREE = 4
OUTPUT_DIM = DEGREE ** 2          # 16

_CHUNK = 256                      # points per inner-loop iteration (mult of 128)


def _sh_kernel(xyz_ref, o_ref):
    # xyz_ref: (3, BLOCK)  channel-major input tile (points on lanes)
    # o_ref:   (BLOCK, 16) channel-last output tile (matches module layout)
    block = o_ref.shape[0]
    n_chunks = block // _CHUNK    # wrapper guarantees block % _CHUNK == 0

    def body(k, carry):
        c0 = pl.multiple_of(k * _CHUNK, _CHUNK)
        # Lane-dense loads; compute in float32 regardless of input dtype.
        x = xyz_ref[0:1, pl.ds(c0, _CHUNK)].astype(jnp.float32)
        y = xyz_ref[1:2, pl.ds(c0, _CHUNK)].astype(jnp.float32)
        z = xyz_ref[2:3, pl.ds(c0, _CHUNK)].astype(jnp.float32)

        xx, yy, zz = x * x, y * y, z * z
        xy, yz, xz = x * y, y * z, x * z
        s2 = xx + yy                      # shared by ch 11/12/13
        d2 = xx - yy                      # shared by ch 8/14
        r4 = 4.0 * zz - s2                # shared by ch 11/13

        rows = [
            jnp.full_like(x, C0),                         # l = 0
            -C1 * y, C1 * z, -C1 * x,                     # l = 1
            C2[0] * xy, C2[1] * yz,                       # l = 2
            C2[2] * (3.0 * zz - 1.0),
            C2[3] * xz, C2[4] * d2,
            C3[0] * y * (3.0 * xx - yy),                  # l = 3
            C3[1] * xy * z,
            C3[2] * y * r4,
            C3[3] * z * (2.0 * zz - 3.0 * s2),
            C3[4] * x * r4,
            C3[5] * z * d2,
            C3[6] * x * (xx - 3.0 * yy),
        ]
        ch = jnp.concatenate(rows, axis=0)                # (16, _CHUNK) channel-major
        # In-kernel channel-major -> point-major transpose (XLU is idle here);
        # single cast to the output dtype at the store.
        o_ref[pl.ds(c0, _CHUNK), :] = jnp.transpose(ch).astype(o_ref.dtype)
        return carry

    lax.fori_loop(0, n_chunks, body, 0)
    # TODO(synk): degree==5 branch (C4 terms) not implemented; module default is 4.


def _round_up(v, m):
    return -(-v // m) * m


def sh_encode(points, *, degree=4, max_block_pts=8192):
    """points: (..., 3) float -> (..., 16) degree-4 SH basis (channel-last)."""
    assert degree == DEGREE, "only the module default degree=4 is implemented"
    orig_shape = points.shape
    assert orig_shape[-1] == 3
    assert jnp.issubdtype(points.dtype, jnp.floating)

    flat = points.reshape(-1, 3)
    n = flat.shape[0]

    # Points per grid step: a multiple of the inner chunk, aiming for >= 2 grid
    # steps on medium inputs (so v7x's two TensorCores both get work) while the
    # double-buffered in/out blocks stay well under scoped VMEM everywhere.
    block_pts = _round_up(max(-(-n // 2), 1), _CHUNK)
    block_pts = max(_CHUNK, min(_round_up(max_block_pts, _CHUNK), block_pts))
    grid = (pl.cdiv(n, block_pts),)

    # Channel-major view of the points: one small XLA relayout pass (~24 B/pt).
    xyz_t = flat.T                                        # (3, n)

    out = pl.pallas_call(
        _sh_kernel,
        out_shape=jax.ShapeDtypeStruct((n, OUTPUT_DIM), flat.dtype),
        grid_spec=pltpu.PrefetchScalarGridSpec(
            num_scalar_prefetch=0,
            grid=grid,
            in_specs=[pl.BlockSpec((3, block_pts), lambda i: (0, i))],
            out_specs=pl.BlockSpec((block_pts, OUTPUT_DIM), lambda i: (i, 0)),
        ),
        compiler_params=pltpu.CompilerParams(
            dimension_semantics=("parallel",),
            vmem_limit_bytes=32 * 1024 * 1024,
        ),
    )(xyz_t)

    return out.reshape(*orig_shape[:-1], OUTPUT_DIM)


def sh_reference(points):
    """Pure-JAX reference mirroring the PyTorch forward (degree=4)."""
    x, y, z = points[..., 0], points[..., 1], points[..., 2]
    xx, yy, zz = x * x, y * y, z * z
    xy, yz, xz = x * y, y * z, x * z
    cols = [
        jnp.full_like(x, C0),
        -C1 * y, C1 * z, -C1 * x,
        C2[0] * xy, C2[1] * yz, C2[2] * (3.0 * zz - 1.0),
        C2[3] * xz, C2[4] * (xx - yy),
        C3[0] * y * (3.0 * xx - yy),
        C3[1] * xy * z,
        C3[2] * y * (4.0 * zz - xx - yy),
        C3[3] * z * (2.0 * zz - 3.0 * xx - 3.0 * yy),
        C3[4] * x * (4.0 * zz - xx - yy),
        C3[5] * z * (xx - yy),
        C3[6] * x * (xx - 3.0 * yy),
    ]
    return jnp.stack(cols, axis=-1)


if __name__ == "__main__":
    key = jax.random.PRNGKey(0)
    # Small input consistent with the module: a batch of 3-D directions.
    pts = jax.random.normal(key, (2, 100, 3), dtype=jnp.float32)
    pts = pts / jnp.linalg.norm(pts, axis=-1, keepdims=True)

    out = jax.block_until_ready(sh_encode(pts))
    ref = sh_reference(pts)

    assert out.shape == (2, 100, OUTPUT_DIM)
    assert out.dtype == jnp.float32
    assert jnp.allclose(out, ref, atol=1e-5, rtol=1e-5)
    print("KERNEL_OK")
</pallas_src>

<mosaic_0001>
module attributes {stable_mosaic.version = 11 : i64} {
  func.func @_sh_kernel(%arg0: i32, %arg1: memref<3x256xf32, #tpu.memory_space<vmem>>, %arg2: memref<256x16xf32, #tpu.memory_space<vmem>>) attributes {dimension_semantics = [#tpu.dimension_semantics<parallel>], iteration_bounds = array<i64: 1>, scalar_prefetch = 0 : i64, scratch_operands = 0 : i64, tpu.core_type = #tpu.core_type<tc>, window_params = [{transform_indices = @transform_0, window_bounds = array<i64: 3, 256>}, {transform_indices = @transform_1, window_bounds = array<i64: 256, 16>}]} {
    %c0_i32 = arith.constant 0 : i32
    %c256_i32 = arith.constant 256 : i32
    %0 = arith.muli %c0_i32, %c256_i32 : i32
    %1 = tpu.assume_multiple %0, 256 : i32
    %c0 = arith.constant 0 : index
    %2 = arith.index_cast %1 : i32 to index
    %3 = vector.load %arg1[%c0, %2] : memref<3x256xf32, #tpu.memory_space<vmem>>, vector<1x256xf32>
    %c1 = arith.constant 1 : index
    %4 = arith.index_cast %1 : i32 to index
    %5 = vector.load %arg1[%c1, %4] : memref<3x256xf32, #tpu.memory_space<vmem>>, vector<1x256xf32>
    %c2 = arith.constant 2 : index
    %6 = arith.index_cast %1 : i32 to index
    %7 = vector.load %arg1[%c2, %6] : memref<3x256xf32, #tpu.memory_space<vmem>>, vector<1x256xf32>
    %8 = arith.mulf %3, %3 : vector<1x256xf32>
    %9 = arith.mulf %5, %5 : vector<1x256xf32>
    %10 = arith.mulf %7, %7 : vector<1x256xf32>
    %11 = arith.mulf %3, %5 : vector<1x256xf32>
    %12 = arith.mulf %5, %7 : vector<1x256xf32>
    %13 = arith.mulf %3, %7 : vector<1x256xf32>
    %14 = arith.addf %8, %9 : vector<1x256xf32>
    %15 = arith.subf %8, %9 : vector<1x256xf32>
    %cst = arith.constant 4.000000e+00 : f32
    %16 = vector.broadcast %cst : f32 to vector<1x256xf32>
    %17 = arith.mulf %16, %10 : vector<1x256xf32>
    %18 = arith.subf %17, %14 : vector<1x256xf32>
    %cst_0 = arith.constant 0.282094806 : f32
    %19 = vector.broadcast %cst_0 : f32 to vector<1x256xf32>
    %cst_1 = arith.constant -0.488602519 : f32
    %20 = vector.broadcast %cst_1 : f32 to vector<1x256xf32>
    %21 = arith.mulf %20, %5 : vector<1x256xf32>
    %cst_2 = arith.constant 0.488602519 : f32
    %22 = vector.broadcast %cst_2 : f32 to vector<1x256xf32>
    %23 = arith.mulf %22, %7 : vector<1x256xf32>
    %cst_3 = arith.constant -0.488602519 : f32
    %24 = vector.broadcast %cst_3 : f32 to vector<1x256xf32>
    %25 = arith.mulf %24, %3 : vector<1x256xf32>
    %cst_4 = arith.constant 1.09254849 : f32
    %26 = vector.broadcast %cst_4 : f32 to vector<1x256xf32>
    %27 = arith.mulf %26, %11 : vector<1x256xf32>
    %cst_5 = arith.constant -1.09254849 : f32
    %28 = vector.broadcast %cst_5 : f32 to vector<1x256xf32>
    %29 = arith.mulf %28, %12 : vector<1x256xf32>
    %cst_6 = arith.constant 3.000000e+00 : f32
    %30 = vector.broadcast %cst_6 : f32 to vector<1x256xf32>
    %31 = arith.mulf %30, %10 : vector<1x256xf32>
    %cst_7 = arith.constant 1.000000e+00 : f32
    %32 = vector.broadcast %cst_7 : f32 to vector<1x256xf32>
    %33 = arith.subf %31, %32 : vector<1x256xf32>
    %cst_8 = arith.constant 0.31539157 : f32
    %34 = vector.broadcast %cst_8 : f32 to vector<1x256xf32>
    %35 = arith.mulf %34, %33 : vector<1x256xf32>
    %cst_9 = arith.constant -1.09254849 : f32
    %36 = vector.broadcast %cst_9 : f32 to vector<1x256xf32>
    %37 = arith.mulf %36, %13 : vector<1x256xf32>
    %cst_10 = arith.constant 0.546274245 : f32
    %38 = vector.broadcast %cst_10 : f32 to vector<1x256xf32>
    %39 = arith.mulf %38, %15 : vector<1x256xf32>
    %cst_11 = arith.constant -0.590043604 : f32
    %40 = vector.broadcast %cst_11 : f32 to vector<1x256xf32>
    %41 = arith.mulf %40, %5 : vector<1x256xf32>
    %cst_12 = arith.constant 3.000000e+00 : f32
    %42 = vector.broadcast %cst_12 : f32 to vector<1x256xf32>
    %43 = arith.mulf %42, %8 : vector<1x256xf32>
    %44 = arith.subf %43, %9 : vector<1x256xf32>
    %45 = arith.mulf %41, %44 : vector<1x256xf32>
    %cst_13 = arith.constant 2.89061141 : f32
    %46 = vector.broadcast %cst_13 : f32 to vector<1x256xf32>
    %47 = arith.mulf %46, %11 : vector<1x256xf32>
    %48 = arith.mulf %47, %7 : vector<1x256xf32>
    %cst_14 = arith.constant -0.457045794 : f32
    %49 = vector.broadcast %cst_14 : f32 to vector<1x256xf32>
    %50 = arith.mulf %49, %5 : vector<1x256xf32>
    %51 = arith.mulf %50, %18 : vector<1x256xf32>
    %cst_15 = arith.constant 0.373176336 : f32
    %52 = vector.broadcast %cst_15 : f32 to vector<1x256xf32>
    %53 = arith.mulf %52, %7 : vector<1x256xf32>
    %cst_16 = arith.constant 2.000000e+00 : f32
    %54 = vector.broadcast %cst_16 : f32 to vector<1x256xf32>
    %55 = arith.mulf %54, %10 : vector<1x256xf32>
    %cst_17 = arith.constant 3.000000e+00 : f32
    %56 = vector.broadcast %cst_17 : f32 to vector<1x256xf32>
    %57 = arith.mulf %56, %14 : vector<1x256xf32>
    %58 = arith.subf %55, %57 : vector<1x256xf32>
    %59 = arith.mulf %53, %58 : vector<1x256xf32>
    %cst_18 = arith.constant -0.457045794 : f32
    %60 = vector.broadcast %cst_18 : f32 to vector<1x256xf32>
    %61 = arith.mulf %60, %3 : vector<1x256xf32>
    %62 = arith.mulf %61, %18 : vector<1x256xf32>
    %cst_19 = arith.constant 1.44530571 : f32
    %63 = vector.broadcast %cst_19 : f32 to vector<1x256xf32>
    %64 = arith.mulf %63, %7 : vector<1x256xf32>
    %65 = arith.mulf %64, %15 : vector<1x256xf32>
    %cst_20 = arith.constant -0.590043604 : f32
    %66 = vector.broadcast %cst_20 : f32 to vector<1x256xf32>
    %67 = arith.mulf %66, %3 : vector<1x256xf32>
    %cst_21 = arith.constant 3.000000e+00 : f32
    %68 = vector.broadcast %cst_21 : f32 to vector<1x256xf32>
    %69 = arith.mulf %68, %9 : vector<1x256xf32>
    %70 = arith.subf %8, %69 : vector<1x256xf32>
    %71 = arith.mulf %67, %70 : vector<1x256xf32>
    %72 = tpu.concatenate %19, %21, %23, %25, %27, %29, %35, %37, %39, %45, %48, %51, %59, %62, %65, %71 in 0 : vector<1x256xf32>, vector<1x256xf32>, vector<1x256xf32>, vector<1x256xf32>, vector<1x256xf32>, vector<1x256xf32>, vector<1x256xf32>, vector<1x256xf32>, vector<1x256xf32>, vector<1x256xf32>, vector<1x256xf32>, vector<1x256xf32>, vector<1x256xf32>, vector<1x256xf32>, vector<1x256xf32>, vector<1x256xf32> -> vector<16x256xf32>
    %73 = tpu.transpose %72, [1, 0] : vector<16x256xf32> -> vector<256x16xf32>
    %74 = arith.index_cast %1 : i32 to index
    %c0_22 = arith.constant 0 : index
    %75 = vector.load %arg2[%74, %c0_22] : memref<256x16xf32, #tpu.memory_space<vmem>>, vector<256x16xf32>
    tpu.vector_store %arg2[%74, %c0_22], %73 {strides = array<i32>} : memref<256x16xf32, #tpu.memory_space<vmem>>, vector<256x16xf32>,
    %c1_i32 = arith.constant 1 : i32
    return
  }
  func.func @transform_0(%arg0: i32) -> (i32, i32) {
    %c0_i32 = arith.constant 0 : i32
    %c0_i32_0 = arith.constant 0 : i32
    return %c0_i32, %arg0 : i32, i32
  }
  func.func @transform_1(%arg0: i32) -> (i32, i32) {
    %c0_i32 = arith.constant 0 : i32
    %c0_i32_0 = arith.constant 0 : i32
    return %arg0, %c0_i32 : i32, i32
  }
}

</mosaic_0001>

<llo_original>
// kernel: tpu_custom_call.1
$region0: #{tpu_custom_call.1}
  #allocation0 [shape = 'u32[]', space=smem, size = 0x4, offset = 0x4, fixed_abs, tag = 'smem constant byte address 0x4 - core index']
  #allocation1 [shape = 'u32[72,128]{1,0:T(1,128)}', space=vmem, size = 0x9000, scoped, tag = 'internal scratch']
  %s0 = inlined_call_operand.hbm [shape: f32[3,200], index: 0, kind: input, shape index: {}]
  %s1 = inlined_call_operand.vmem [shape: f32[200,16], index: 1, kind: output, shape index: {}]
  %s2 = sld [smem:[#allocation0]]
  $region52: #{tpu_custom_call.1} parent=0
    _
  %s4 = ssub.s32 1, %s2
  %s5 = scalar_select 0, %s4, %s2
  $region1: #{tpu_custom_call.1} parent=0
    #allocation2 [shape = 'u8[4096]{0}', space=vmem, size = 0x1000, scoped, tag = 'input window, operand 0, single buffered']
    #allocation3 [shape = 's32[1]{0}', space=sflag, size = 0x4, scoped, tag = 'scoped memory for tpu_custom_call.1']
    #allocation4 [shape = 'u8[131072]{0}', space=vmem, size = 0x20000, scoped, tag = 'output window, operand 0, single buffered']
    %6 = vsyncpa [#allocation3], 0
    // Predicated region
    $region2: #{tpu_custom_call.1} parent=1 // pred_check
      _
    $region3: #{tpu_custom_call.1} parent=1 // pred_check_branch
      %8 = sbr.rel (0) target = $region5
    $region4: #{tpu_custom_call.1} parent=1 // pred_region
      %10 = vsyncadd [#allocation3], 0
      %s12 = sshll.u32 %s0, 4
      %s13 = int_to_ptr.hbm [resolvable:$true] %s12
      %s14 = sshll.u32 [#allocation2], 4
      %s15 = int_to_ptr.vmem [resolvable:$true] %s14
      %17 = dma.hbm_to_vmem [thread:$0]  %s13, 128, %s15, [#allocation3]
    $region5: #{tpu_custom_call.1} parent=1 // pred_fallthru
      _
    // Predicated region
    $region6: #{tpu_custom_call.1} parent=1 // pred_check
      _
    $region7: #{tpu_custom_call.1} parent=1 // pred_check_branch
      %19 = sbr.rel (0) target = $region9
    $region8: #{tpu_custom_call.1} parent=1 // pred_region
      %21 = dma.done [#allocation3], 128
    $region9: #{tpu_custom_call.1} parent=1 // pred_fallthru
      _
    %v22 = vld [vmem:[#allocation2] ss:$4 sm:$0x3]
    %s23 = scalar_lea.vmem [#allocation2], 1
    %v24 = vld [vmem:[%s23] ss:$4 sm:$0x3]
    %s25 = scalar_lea.vmem [#allocation2], 2
    %v26 = vld [vmem:[%s25] ss:$4 sm:$0x3]
    %v27 = vmul.f32 %v22, %v22
    %v28 = vmul.f32 %v24, %v24
    %v29 = vmul.f32 %v26, %v26
    %v30 = vmul.f32 %v22, %v24
    %v31 = vmul.f32 %v24, %v26
    %v32 = vmul.f32 %v22, %v26
    %v33 = vadd.f32 %v27, %v28
    %v34 = vsub.f32 %v27, %v28
    %v35 = vmul.f32 %v29, 4.0
    %v36 = vsub.f32 %v35, %v33
    %v37 = vmul.f32 %v24, -0.48860252
    %v38 = vmul.f32 %v26, 0.48860252
    %v39 = vmul.f32 %v22, -0.48860252
    %v40 = vmul.f32 %v30, 1.0925485
    %v41 = vmul.f32 %v31, -1.0925485
    %v42 = vmul.f32 %v29, 3.0
    %v43 = vsub.f32 %v42, 1.0
    %v44 = vmul.f32 %v43, 0.31539157
    %v45 = vmul.f32 %v32, -1.0925485
    %v46 = vmul.f32 %v34, 0.54627424
    %v47 = vmul.f32 %v24, -0.5900436
    %v48 = vmul.f32 %v27, 3.0
    %v49 = vsub.f32 %v48, %v28
    %v50 = vmul.f32 %v47, %v49
    %v51 = vmul.f32 %v30, 2.8906114
    %v52 = vmul.f32 %v51, %v26
    %v53 = vmul.f32 %v24, -0.4570458
    %v54 = vmul.f32 %v53, %v36
    %v55 = vmul.f32 %v26, 0.37317634
    %v56 = vmul.f32 %v29, 2.0
    %v57 = vmul.f32 %v33, 3.0
    %v58 = vsub.f32 %v56, %v57
    %v59 = vmul.f32 %v55, %v58
    %v60 = vmul.f32 %v22, -0.4570458
    %v61 = vmul.f32 %v60, %v36
    %v62 = vmul.f32 %v26, 1.4453057
    %v63 = vmul.f32 %v62, %v34
    %v64 = vmul.f32 %v22, -0.5900436
    %v65 = vmul.f32 %v28, 3.0
    %v66 = vsub.f32 %v27, %v65
    %v67 = vmul.f32 %v64, %v66
    %v69 = vperm.slane %v37, 0
    %v70 = vperm.slane %v37, 1
    %v74 = vperm.slane %v38, 0
    %v75 = vperm.slane %v38, 1
    %v79 = vperm.slane %v39, 0
    %v80 = vperm.slane %v39, 1
    %v84 = vperm.slane %v40, 0
    %v85 = vperm.slane %v40, 1
    %v89 = vperm.slane %v41, 0
    %v90 = vperm.slane %v41, 1
    %v94 = vperm.slane %v44, 0
    %v95 = vperm.slane %v44, 1
    %v99 = vperm.slane %v45, 0
    %v100 = vperm.slane %v45, 1
    %v104 = vperm.slane %v46, 0
    %v105 = vperm.slane %v46, 1
    %v109 = vperm.slane %v50, 0
    %v110 = vperm.slane %v50, 1
    %v114 = vperm.slane %v52, 0
    %v115 = vperm.slane %v52, 1
    %v119 = vperm.slane %v54, 0
    %v120 = vperm.slane %v54, 1
    %v124 = vperm.slane %v59, 0
    %v125 = vperm.slane %v59, 1
    %v129 = vperm.slane %v61, 0
    %v130 = vperm.slane %v61, 1
    %v134 = vperm.slane %v63, 0
    %v135 = vperm.slane %v63, 1
    %v139 = vperm.slane %v67, 0
    %v140 = vperm.slane %v67, 1
    %vm143 = vcmask 1040384
    %v144 = vsel %vm143, 0.2820948, %v69
    %v145 = vsel %vm143, 0.2820948, %v70
    %vm146 = vcmask 1041408
    %v147 = vsel %vm146, %v144, %v74
    %v148 = vsel %vm146, %v145, %v75
    %vm149 = vcmask 1042432
    %v150 = vsel %vm149, %v147, %v79
    %v151 = vsel %vm149, %v148, %v80
    %vm152 = vcmask 1043456
    %v153 = vsel %vm152, %v150, %v84
    %v154 = vsel %vm152, %v151, %v85
    %vm155 = vcmask 1044480
    %v156 = vsel %vm155, %v153, %v89
    %v157 = vsel %vm155, %v154, %v90
    %vm158 = vcmask 1045504
    %v159 = vsel %vm158, %v156, %v94
    %v160 = vsel %vm158, %v157, %v95
    %vm161 = vcmask 1046528
    %v162 = vsel %vm161, %v159, %v99
    %v163 = vsel %vm161, %v160, %v100
    %v164 = vsel %vm143, %v104, %v109
    %v165 = vsel %vm143, %v105, %v110
    %v166 = vsel %vm146, %v164, %v114
    %v167 = vsel %vm146, %v165, %v115
    %v168 = vsel %vm149, %v166, %v119
    %v169 = vsel %vm149, %v167, %v120
    %v170 = vsel %vm152, %v168, %v124
    %v171 = vsel %vm152, %v169, %v125
    %v172 = vsel %vm155, %v170, %v129
    %v173 = vsel %vm155, %v171, %v130
    %v174 = vsel %vm158, %v172, %v134
    %v175 = vsel %vm158, %v173, %v135
    %v176 = vsel %vm161, %v174, %v139
    %v177 = vsel %vm161, %v175, %v140
    %178 = vxpose.xlu0.b32.start [1/16] %v162, 128
    %179 = vxpose.xlu0.b32.cont [2/16] %v176, 128
    %180 = vxpose.xlu0.b32.cont [3/16] 0.0, 128
    %181 = vxpose.xlu0.b32.cont [4/16] 0.0, 128
    %182 = vxpose.xlu0.b32.cont [5/16] 0.0, 128
    %183 = vxpose.xlu0.b32.cont [6/16] 0.0, 128
    %184 = vxpose.xlu0.b32.cont [7/16] 0.0, 128
    %185 = vxpose.xlu0.b32.cont [8/16] 0.0, 128
    %186 = vxpose.xlu0.b32.cont [9/16] 0.0, 128
    %187 = vxpose.xlu0.b32.cont [10/16] 0.0, 128
    %188 = vxpose.xlu0.b32.cont [11/16] 0.0, 128
    %189 = vxpose.xlu0.b32.cont [12/16] 0.0, 128
    %190 = vxpose.xlu0.b32.cont [13/16] 0.0, 128
    %191 = vxpose.xlu0.b32.cont [14/16] 0.0, 128
    %192 = vxpose.xlu0.b32.cont [15/16] 0.0, 128
    %193 = vxpose.xlu0.b32.end [16/16] 0.0, 128
    %v194 = vpop.trf.xlu0
    %v195 = vpop.trf.xlu0
    %v196 = vpop.trf.xlu0
    %v197 = vpop.trf.xlu0
    %v198 = vpop.trf.xlu0
    %v199 = vpop.trf.xlu0
    %v200 = vpop.trf.xlu0
    %v201 = vpop.trf.xlu0
    %v202 = vpop.trf.xlu0
    %v203 = vpop.trf.xlu0
    %v204 = vpop.trf.xlu0
    %v205 = vpop.trf.xlu0
    %v206 = vpop.trf.xlu0
    %v207 = vpop.trf.xlu0
    %v208 = vpop.trf.xlu0
    %v209 = vpop.trf.xlu0
    %210 = vxpose.xlu0.b32.start [1/16] %v163, 128
    %211 = vxpose.xlu0.b32.cont [2/16] %v177, 128
    %212 = vxpose.xlu0.b32.cont [3/16] 0.0, 128
    %213 = vxpose.xlu0.b32.cont [4/16] 0.0, 128
    %214 = vxpose.xlu0.b32.cont [5/16] 0.0, 128
    %215 = vxpose.xlu0.b32.cont [6/16] 0.0, 128
    %216 = vxpose.xlu0.b32.cont [7/16] 0.0, 128
    %217 = vxpose.xlu0.b32.cont [8/16] 0.0, 128
    %218 = vxpose.xlu0.b32.cont [9/16] 0.0, 128
    %219 = vxpose.xlu0.b32.cont [10/16] 0.0, 128
    %220 = vxpose.xlu0.b32.cont [11/16] 0.0, 128
    %221 = vxpose.xlu0.b32.cont [12/16] 0.0, 128
    %222 = vxpose.xlu0.b32.cont [13/16] 0.0, 128
    %223 = vxpose.xlu0.b32.cont [14/16] 0.0, 128
    %224 = vxpose.xlu0.b32.cont [15/16] 0.0, 128
    %225 = vxpose.xlu0.b32.end [16/16] 0.0, 128
    %v226 = vpop.trf.xlu0
    %v227 = vpop.trf.xlu0
    %v228 = vpop.trf.xlu0
    %v229 = vpop.trf.xlu0
    %v230 = vpop.trf.xlu0
    %v231 = vpop.trf.xlu0
    %v232 = vpop.trf.xlu0
    %v233 = vpop.trf.xlu0
    %v234 = vpop.trf.xlu0
    %v235 = vpop.trf.xlu0
    %v236 = vpop.trf.xlu0
    %v237 = vpop.trf.xlu0
    %v238 = vpop.trf.xlu0
    %v239 = vpop.trf.xlu0
    %v240 = vpop.trf.xlu0
    %v241 = vpop.trf.xlu0
    %vm242 = vcmask 130048
    %243 = vst.msk [vmem:[#allocation4] sm:$0xff] %vm242, %v194
    %244 = vst.msk [vmem:[#allocation4 + $0x8] sm:$0xff] %vm242, %v195
    %245 = vst.msk [vmem:[#allocation4 + $0x10] sm:$0xff] %vm242, %v196
    %246 = vst.msk [vmem:[#allocation4 + $0x18] sm:$0xff] %vm242, %v197
    %247 = vst.msk [vmem:[#allocation4 + $0x20] sm:$0xff] %vm242, %v198
    %248 = vst.msk [vmem:[#allocation4 + $0x28] sm:$0xff] %vm242, %v199
    %249 = vst.msk [vmem:[#allocation4 + $0x30] sm:$0xff] %vm242, %v200
    %250 = vst.msk [vmem:[#allocation4 + $0x38] sm:$0xff] %vm242, %v201
    %251 = vst.msk [vmem:[#allocation4 + $0x40] sm:$0xff] %vm242, %v202
    %252 = vst.msk [vmem:[#allocation4 + $0x48] sm:$0xff] %vm242, %v203
    %253 = vst.msk [vmem:[#allocation4 + $0x50] sm:$0xff] %vm242, %v204
    %254 = vst.msk [vmem:[#allocation4 + $0x58] sm:$0xff] %vm242, %v205
    %255 = vst.msk [vmem:[#allocation4 + $0x60] sm:$0xff] %vm242, %v206
    %256 = vst.msk [vmem:[#allocation4 + $0x68] sm:$0xff] %vm242, %v207
    %257 = vst.msk [vmem:[#allocation4 + $0x70] sm:$0xff] %vm242, %v208
    %258 = vst.msk [vmem:[#allocation4 + $0x78] sm:$0xff] %vm242, %v209
    %259 = vst.msk [vmem:[#allocation4 + $0x80] sm:$0xff] %vm242, %v226
    %260 = vst.msk [vmem:[#allocation4 + $0x88] sm:$0xff] %vm242, %v227
    %261 = vst.msk [vmem:[#allocation4 + $0x90] sm:$0xff] %vm242, %v228
    %262 = vst.msk [vmem:[#allocation4 + $0x98] sm:$0xff] %vm242, %v229
    %263 = vst.msk [vmem:[#allocation4 + $0xa0] sm:$0xff] %vm242, %v230
    %264 = vst.msk [vmem:[#allocation4 + $0xa8] sm:$0xff] %vm242, %v231
    %265 = vst.msk [vmem:[#allocation4 + $0xb0] sm:$0xff] %vm242, %v232
    %266 = vst.msk [vmem:[#allocation4 + $0xb8] sm:$0xff] %vm242, %v233
    %267 = vst.msk [vmem:[#allocation4 + $0xc0] sm:$0xff] %vm242, %v234
    %268 = vst.msk [vmem:[#allocation4 + $0xc8] sm:$0xff] %vm242, %v235
    %269 = vst.msk [vmem:[#allocation4 + $0xd0] sm:$0xff] %vm242, %v236
    %270 = vst.msk [vmem:[#allocation4 + $0xd8] sm:$0xff] %vm242, %v237
    %271 = vst.msk [vmem:[#allocation4 + $0xe0] sm:$0xff] %vm242, %v238
    %272 = vst.msk [vmem:[#allocation4 + $0xe8] sm:$0xff] %vm242, %v239
    %273 = vst.msk [vmem:[#allocation4 + $0xf0] sm:$0xff] %vm242, %v240
    %274 = vst.msk [vmem:[#allocation4 + $0xf8] sm:$0xff] %vm242, %v241
    // Predicated region
    $region10: #{tpu_custom_call.1} parent=1 // pred_check
      _
    $region11: #{tpu_custom_call.1} parent=1 // pred_check_branch
      %276 = sbr.rel (0) target = $region13
    $region12: #{tpu_custom_call.1} parent=1 // pred_region
      // Predicated region
      $region14: #{tpu_custom_call.1} parent=12 // pred_check
        _
      $region15: #{tpu_custom_call.1} parent=12 // pred_check_branch
        %278 = sbr.rel (0) target = $region17
      $region16: #{tpu_custom_call.1} parent=12 // pred_region
        // Predicated region
        $region18: #{tpu_custom_call.1} parent=16 // pred_check
          _
        $region19: #{tpu_custom_call.1} parent=16 // pred_check_branch
          %280 = sbr.rel (0) target = $region21
        $region20: #{tpu_custom_call.1} parent=16 // pred_region
          // Predicated region
          $region33: #{tpu_custom_call.1} parent=20 // pred_check
            _
          $region34: #{tpu_custom_call.1} parent=20 // pred_check_branch
            %344 = sbr.rel (0) target = $region36
          $region35: #{tpu_custom_call.1} parent=20 // pred_region
            loop: start=0, step=1, limit=1
            $region37: #{tpu_custom_call.1} parent=35 // loop_pre_header
              _
            $region38: #{tpu_custom_call.1} parent=35 // loop_header
              %s346 = sphi 0, %s350
              %p347 = scmp.ge.s32.totalorder %s346, 1
              %s351 = sphi [#allocation4], [#allocation4]
              %s352 = sphi %s1, %s1
            $region39: #{tpu_custom_call.1} parent=35 // loop_header_branch
              %349 = sbr.rel (%p347) target = $region43
            $region40: #{tpu_custom_call.1} parent=35 // loop_body
              %v353 = vld [vmem:[%s351] sm:$0xff]
              %354 = vst [vmem:[%s352] sm:$0xff] %v353
              %v355 = vld [vmem:[%s351 + $0x8] sm:$0xff]
              %356 = vst [vmem:[%s352 + $0x8] sm:$0xff] %v355
              %v357 = vld [vmem:[%s351 + $0x10] sm:$0xff]
              %358 = vst [vmem:[%s352 + $0x10] sm:$0xff] %v357
              %v359 = vld [vmem:[%s351 + $0x18] sm:$0xff]
              %360 = vst [vmem:[%s352 + $0x18] sm:$0xff] %v359
              %v361 = vld [vmem:[%s351 + $0x20] sm:$0xff]
              %362 = vst [vmem:[%s352 + $0x20] sm:$0xff] %v361
              %v363 = vld [vmem:[%s351 + $0x28] sm:$0xff]
              %364 = vst [vmem:[%s352 + $0x28] sm:$0xff] %v363
              %v365 = vld [vmem:[%s351 + $0x30] sm:$0xff]
              %366 = vst [vmem:[%s352 + $0x30] sm:$0xff] %v365
              %v367 = vld [vmem:[%s351 + $0x38] sm:$0xff]
              %368 = vst [vmem:[%s352 + $0x38] sm:$0xff] %v367
              %v369 = vld [vmem:[%s351 + $0x40] sm:$0xff]
              %370 = vst [vmem:[%s352 + $0x40] sm:$0xff] %v369
              %v371 = vld [vmem:[%s351 + $0x48] sm:$0xff]
              %372 = vst [vmem:[%s352 + $0x48] sm:$0xff] %v371
              %v373 = vld [vmem:[%s351 + $0x50] sm:$0xff]
              %374 = vst [vmem:[%s352 + $0x50] sm:$0xff] %v373
              %v375 = vld [vmem:[%s351 + $0x58] sm:$0xff]
              %376 = vst [vmem:[%s352 + $0x58] sm:$0xff] %v375
              %v377 = vld [vmem:[%s351 + $0x60] sm:$0xff]
              %378 = vst [vmem:[%s352 + $0x60] sm:$0xff] %v377
              %v379 = vld [vmem:[%s351 + $0x68] sm:$0xff]
              %380 = vst [vmem:[%s352 + $0x68] sm:$0xff] %v379
              %v381 = vld [vmem:[%s351 + $0x70] sm:$0xff]
              %382 = vst [vmem:[%s352 + $0x70] sm:$0xff] %v381
              %v383 = vld [vmem:[%s351 + $0x78] sm:$0xff]
              %384 = vst [vmem:[%s352 + $0x78] sm:$0xff] %v383
              %v385 = vld [vmem:[%s351 + $0x80] sm:$0xff]
              %386 = vst [vmem:[%s352 + $0x80] sm:$0xff] %v385
              %v387 = vld [vmem:[%s351 + $0x88] sm:$0xff]
              %388 = vst [vmem:[%s352 + $0x88] sm:$0xff] %v387
              %v389 = vld [vmem:[%s351 + $0x90] sm:$0xff]
              %390 = vst [vmem:[%s352 + $0x90] sm:$0xff] %v389
              %v391 = vld [vmem:[%s351 + $0x98] sm:$0xff]
              %392 = vst [vmem:[%s352 + $0x98] sm:$0xff] %v391
              %v393 = vld [vmem:[%s351 + $0xa0] sm:$0xff]
              %394 = vst [vmem:[%s352 + $0xa0] sm:$0xff] %v393
              %v395 = vld [vmem:[%s351 + $0xa8] sm:$0xff]
              %396 = vst [vmem:[%s352 + $0xa8] sm:$0xff] %v395
              %v397 = vld [vmem:[%s351 + $0xb0] sm:$0xff]
              %398 = vst [vmem:[%s352 + $0xb0] sm:$0xff] %v397
              %v399 = vld [vmem:[%s351 + $0xb8] sm:$0xff]
              %400 = vst [vmem:[%s352 + $0xb8] sm:$0xff] %v399
              %v401 = vld [vmem:[%s351 + $0xc0] sm:$0xff]
              %402 = vst [vmem:[%s352 + $0xc0] sm:$0xff] %v401
            $region41: #{tpu_custom_call.1} parent=35 // loop_footer
              %s350 = sadd.s32 1, %s346
            $region42: #{tpu_custom_call.1} parent=35 // loop_footer_branch
              %345 = sbr.rel target = $region38
            $region43: #{tpu_custom_call.1} parent=35 // loop_exit
              _
          $region36: #{tpu_custom_call.1} parent=20 // pred_fallthru
            _
          // Predicated region
          $region44: #{tpu_custom_call.1} parent=20 // pred_check
            _
          $region45: #{tpu_custom_call.1} parent=20 // pred_check_branch
            %404 = sbr.rel target = $region47
          $region46: #{tpu_custom_call.1} parent=20 // pred_region
            _
          $region47: #{tpu_custom_call.1} parent=20 // pred_fallthru
            _
        $region21: #{tpu_custom_call.1} parent=16 // pred_fallthru
          _
        // Predicated region
        $region22: #{tpu_custom_call.1} parent=16 // pred_check
          _
        $region23: #{tpu_custom_call.1} parent=16 // pred_check_branch
          %282 = sbr.rel target = $region25
        $region24: #{tpu_custom_call.1} parent=16 // pred_region
          %s284 = ssub.s32 256, 1
          loop: start=0, step=1, limit=1
          $region26: #{tpu_custom_call.1} parent=24 // loop_pre_header
            _
          $region27: #{tpu_custom_call.1} parent=24 // loop_header
            %s286 = sphi 0, %s290
            %p287 = scmp.ge.s32.totalorder %s286, 1
            %s291 = sphi [#allocation4], [#allocation4]
            %s292 = sphi %s1, %s1
          $region28: #{tpu_custom_call.1} parent=24 // loop_header_branch
            %289 = sbr.rel (%p287) target = $region32
          $region29: #{tpu_custom_call.1} parent=24 // loop_body
            %v293 = vld [vmem:[%s291] sm:%s284]
            %294 = vst [vmem:[%s292] sm:%s284] %v293
            %v295 = vld [vmem:[%s291 + $0x8] sm:%s284]
            %296 = vst [vmem:[%s292 + $0x8] sm:%s284] %v295
            %v297 = vld [vmem:[%s291 + $0x10] sm:%s284]
            %298 = vst [vmem:[%s292 + $0x10] sm:%s284] %v297
            %v299 = vld [vmem:[%s291 + $0x18] sm:%s284]
            %300 = vst [vmem:[%s292 + $0x18] sm:%s284] %v299
            %v301 = vld [vmem:[%s291 + $0x20] sm:%s284]
            %302 = vst [vmem:[%s292 + $0x20] sm:%s284] %v301
            %v303 = vld [vmem:[%s291 + $0x28] sm:%s284]
            %304 = vst [vmem:[%s292 + $0x28] sm:%s284] %v303
            %v305 = vld [vmem:[%s291 + $0x30] sm:%s284]
            %306 = vst [vmem:[%s292 + $0x30] sm:%s284] %v305
            %v307 = vld [vmem:[%s291 + $0x38] sm:%s284]
            %308 = vst [vmem:[%s292 + $0x38] sm:%s284] %v307
            %v309 = vld [vmem:[%s291 + $0x40] sm:%s284]
            %310 = vst [vmem:[%s292 + $0x40] sm:%s284] %v309
            %v311 = vld [vmem:[%s291 + $0x48] sm:%s284]
            %312 = vst [vmem:[%s292 + $0x48] sm:%s284] %v311
            %v313 = vld [vmem:[%s291 + $0x50] sm:%s284]
            %314 = vst [vmem:[%s292 + $0x50] sm:%s284] %v313
            %v315 = vld [vmem:[%s291 + $0x58] sm:%s284]
            %316 = vst [vmem:[%s292 + $0x58] sm:%s284] %v315
            %v317 = vld [vmem:[%s291 + $0x60] sm:%s284]
            %318 = vst [vmem:[%s292 + $0x60] sm:%s284] %v317
            %v319 = vld [vmem:[%s291 + $0x68] sm:%s284]
            %320 = vst [vmem:[%s292 + $0x68] sm:%s284] %v319
            %v321 = vld [vmem:[%s291 + $0x70] sm:%s284]
            %322 = vst [vmem:[%s292 + $0x70] sm:%s284] %v321
            %v323 = vld [vmem:[%s291 + $0x78] sm:%s284]
            %324 = vst [vmem:[%s292 + $0x78] sm:%s284] %v323
            %v325 = vld [vmem:[%s291 + $0x80] sm:%s284]
            %326 = vst [vmem:[%s292 + $0x80] sm:%s284] %v325
            %v327 = vld [vmem:[%s291 + $0x88] sm:%s284]
            %328 = vst [vmem:[%s292 + $0x88] sm:%s284] %v327
            %v329 = vld [vmem:[%s291 + $0x90] sm:%s284]
            %330 = vst [vmem:[%s292 + $0x90] sm:%s284] %v329
            %v331 = vld [vmem:[%s291 + $0x98] sm:%s284]
            %332 = vst [vmem:[%s292 + $0x98] sm:%s284] %v331
            %v333 = vld [vmem:[%s291 + $0xa0] sm:%s284]
            %334 = vst [vmem:[%s292 + $0xa0] sm:%s284] %v333
            %v335 = vld [vmem:[%s291 + $0xa8] sm:%s284]
            %336 = vst [vmem:[%s292 + $0xa8] sm:%s284] %v335
            %v337 = vld [vmem:[%s291 + $0xb0] sm:%s284]
            %338 = vst [vmem:[%s292 + $0xb0] sm:%s284] %v337
            %v339 = vld [vmem:[%s291 + $0xb8] sm:%s284]
            %340 = vst [vmem:[%s292 + $0xb8] sm:%s284] %v339
            %v341 = vld [vmem:[%s291 + $0xc0] sm:%s284]
            %342 = vst [vmem:[%s292 + $0xc0] sm:%s284] %v341
          $region30: #{tpu_custom_call.1} parent=24 // loop_footer
            %s290 = sadd.s32 1, %s286
          $region31: #{tpu_custom_call.1} parent=24 // loop_footer_branch
            %285 = sbr.rel target = $region27
          $region32: #{tpu_custom_call.1} parent=24 // loop_exit
            _
        $region25: #{tpu_custom_call.1} parent=16 // pred_fallthru
          _
      $region17: #{tpu_custom_call.1} parent=12 // pred_fallthru
        _
      %405 = vnop
    $region13: #{tpu_custom_call.1} parent=1 // pred_fallthru
      _
    // Predicated region
    $region48: #{tpu_custom_call.1} parent=1 // pred_check
      _
    $region49: #{tpu_custom_call.1} parent=1 // pred_check_branch
      %407 = sbr.rel (0) target = $region51
    $region50: #{tpu_custom_call.1} parent=1 // pred_region
      _
    $region51: #{tpu_custom_call.1} parent=1 // pred_fallthru
      _
    %408 = vsyncpa [#allocation3], 1

</llo_original>
